<compile_context>
chip_gen: v6e
topology: v6e:2x2x1
jax: 0.10.0
libtpu: 0.0.40
codegen_flags: <defaults>
</compile_context>

<pallas_src>
import functools
import math

import jax
import jax.numpy as jnp
import numpy as np
from jax.experimental import pallas as pl
from jax.experimental.pallas import tpu as pltpu


# ----------------------------------------------------------------------------
# Fused projection + flash-attention kernel
# ----------------------------------------------------------------------------
def _flash_attn_kernel(x_q_ref, x_kv_ref, wq_ref, bq_ref, wkv_ref, bkv_ref,
                       o_ref, q_scr, m_scr, l_scr, acc_scr, *, scale, attn_dim):
    # x_q_ref:  (block_q,  D)   rows whose attention output this block produces
    # x_kv_ref: (block_kv, D)   rows attended over on this kv step
    # wq_ref:   (D, A)  bq_ref: (1, A)
    # wkv_ref:  (D, A+D) fused K|V weight   bkv_ref: (1, A+D)
    kv = pl.program_id(2)

    @pl.when(kv == 0)
    def _():
        # Q projection for this query block: done once per (b, qi), cached.
        q = jnp.dot(x_q_ref[...], wq_ref[...],
                    preferred_element_type=jnp.float32)
        q = (q + bq_ref[...]) * scale                 # scale q, not the scores
        q_scr[...] = q.astype(jnp.bfloat16)
        m_scr[...] = jnp.full(m_scr.shape, -jnp.inf, m_scr.dtype)
        l_scr[...] = jnp.zeros(l_scr.shape, l_scr.dtype)
        acc_scr[...] = jnp.zeros(acc_scr.shape, acc_scr.dtype)

    # Fused K|V projection for this kv block: one matmul with N = A + D.
    kvp = jnp.dot(x_kv_ref[...], wkv_ref[...],
                  preferred_element_type=jnp.float32) + bkv_ref[...]
    k = kvp[:, :attn_dim].astype(jnp.bfloat16)        # (block_kv, A)
    v = kvp[:, attn_dim:].astype(jnp.bfloat16)        # (block_kv, D)

    # Scores on the MXU: bf16 operands, f32 accumulation.
    s = jnp.dot(q_scr[...], k.T,
                preferred_element_type=jnp.float32)   # (block_q, block_kv)

    # Online (flash-style) softmax update.
    m_prev = m_scr[...]
    m_new = jnp.maximum(m_prev, s.max(axis=-1, keepdims=True))
    alpha = jnp.exp(m_prev - m_new)
    p = jnp.exp(s - m_new)
    l_scr[...] = alpha * l_scr[...] + p.sum(axis=-1, keepdims=True)
    acc_scr[...] = alpha * acc_scr[...] + jnp.dot(
        p.astype(jnp.bfloat16), v, preferred_element_type=jnp.float32)
    m_scr[...] = m_new

    @pl.when(kv == pl.num_programs(2) - 1)
    def _():
        inv_l = pl.reciprocal(l_scr[...], approx=True)   # denominator >= 1
        o_ref[...] = (acc_scr[...] * inv_l).astype(o_ref.dtype)


# ----------------------------------------------------------------------------
# Wrapper: parameter packing (PyTorch nn.Linear layout) + pallas_call
# ----------------------------------------------------------------------------
def self_attention(x, wq, bq, wk, bk, wv, bv, *, block_q=512, block_kv=512):
    """x: (B, L, D). PyTorch-layout params: wq/wk (A, D), wv (D, D), biases 1-D."""
    B, L, D = x.shape
    A = wq.shape[0]
    block_q = min(block_q, L)
    block_kv = min(block_kv, L)
    assert L % block_q == 0 and L % block_kv == 0, "L must divide block sizes"

    # Wrapper-side layout plumbing (free): transpose to (in, out), fuse K|V.
    w_q = wq.T                                         # (D, A)
    w_kv = jnp.concatenate([wk.T, wv.T], axis=1)       # (D, A + D)
    b_q = bq.reshape(1, A)
    b_kv = jnp.concatenate([bk, bv]).reshape(1, A + D)

    scale = 1.0 / math.sqrt(D)   # module uses x.shape[-1] ** 0.5 (= input_dim)
    grid = (B, L // block_q, L // block_kv)

    flops = (2 * B * L * D * (2 * A + D)        # fused projections
             + 2 * B * L * L * A                # scores
             + 2 * B * L * L * D)               # attend
    bytes_accessed = 4 * (2 * B * L * D                 # x read twice
                          + D * (2 * A + D) + (2 * A + D)
                          + B * L * D)                  # output

    kernel = functools.partial(_flash_attn_kernel, scale=scale, attn_dim=A)
    return pl.pallas_call(
        kernel,
        out_shape=jax.ShapeDtypeStruct((B, L, D), x.dtype),
        grid_spec=pltpu.PrefetchScalarGridSpec(
            num_scalar_prefetch=0,
            grid=grid,
            in_specs=[
                pl.BlockSpec((None, block_q, D), lambda b, qi, ki: (b, qi, 0)),
                pl.BlockSpec((None, block_kv, D), lambda b, qi, ki: (b, ki, 0)),
                pl.BlockSpec((D, A), lambda b, qi, ki: (0, 0)),
                pl.BlockSpec((1, A), lambda b, qi, ki: (0, 0)),
                pl.BlockSpec((D, A + D), lambda b, qi, ki: (0, 0)),
                pl.BlockSpec((1, A + D), lambda b, qi, ki: (0, 0)),
            ],
            out_specs=pl.BlockSpec((None, block_q, D),
                                   lambda b, qi, ki: (b, qi, 0)),
            scratch_shapes=[
                pltpu.VMEM((block_q, A), jnp.bfloat16),   # cached (scaled) q
                pltpu.VMEM((block_q, 1), jnp.float32),    # running max m
                pltpu.VMEM((block_q, 1), jnp.float32),    # running sum l
                pltpu.VMEM((block_q, D), jnp.float32),    # output accumulator
            ],
        ),
        compiler_params=pltpu.CompilerParams(
            dimension_semantics=("parallel", "parallel", "arbitrary")),
        cost_estimate=pl.CostEstimate(flops=flops,
                                      transcendentals=B * L * L,
                                      bytes_accessed=bytes_accessed),
    )(x, x, w_q, b_q, w_kv, b_kv)


# ----------------------------------------------------------------------------
# Pure-JAX reference (matches the PyTorch module semantics)
# ----------------------------------------------------------------------------
def _self_attention_ref(x, wq, bq, wk, bk, wv, bv):
    d = x.shape[-1]
    q = x @ wq.T + bq
    k = x @ wk.T + bk
    v = x @ wv.T + bv
    s = jnp.einsum("bqa,bka->bqk", q, k) / math.sqrt(d)
    a = jax.nn.softmax(s, axis=-1)
    return jnp.einsum("bqk,bkd->bqd", a, v)


# ----------------------------------------------------------------------------
if __name__ == "__main__":
    key = jax.random.PRNGKey(0)
    kx, kq, kbq, kk, kbk, kvw, kbv = jax.random.split(key, 7)

    B, L = 2, 16          # batch, sequence length
    D, A = 32, 16         # input_dim, attention_dim

    x = jax.random.normal(kx, (B, L, D), jnp.float32)

    # Parameters in PyTorch nn.Linear layout: weight (out, in), bias (out,).
    wq = 0.2 * jax.random.normal(kq, (A, D), jnp.float32)
    bq = 0.05 * jax.random.normal(kbq, (A,), jnp.float32)
    wk = 0.2 * jax.random.normal(kk, (A, D), jnp.float32)
    bk = 0.05 * jax.random.normal(kbk, (A,), jnp.float32)
    wv = 0.2 * jax.random.normal(kvw, (D, D), jnp.float32)
    bv = 0.05 * jax.random.normal(kbv, (D,), jnp.float32)

    # Small blocks (8) so the online-softmax / kv accumulation path is actually
    # exercised at this toy L; real configs should use the 512-ish defaults.
    out = self_attention(x, wq, bq, wk, bk, wv, bv, block_q=8, block_kv=8)
    out = jax.block_until_ready(out)
    assert out.shape == (B, L, D)

    ref = _self_attention_ref(x, wq, bq, wk, bk, wv, bv)
    # bf16 MXU operands + approx reciprocal -> slightly relaxed tolerance.
    np.testing.assert_allclose(np.asarray(out), np.asarray(ref),
                               atol=2e-2, rtol=2e-2)

    print("KERNEL_OK")
</pallas_src>

<mosaic_0001>
module attributes {stable_mosaic.version = 11 : i64} {
  func.func @_flash_attn_kernel(%arg0: i32, %arg1: i32, %arg2: i32, %arg3: memref<1x8x32xf32, #tpu.memory_space<vmem>>, %arg4: memref<1x8x32xf32, #tpu.memory_space<vmem>>, %arg5: memref<32x16xf32, #tpu.memory_space<vmem>>, %arg6: memref<1x16xf32, #tpu.memory_space<vmem>>, %arg7: memref<32x48xf32, #tpu.memory_space<vmem>>, %arg8: memref<1x48xf32, #tpu.memory_space<vmem>>, %arg9: memref<1x8x32xf32, #tpu.memory_space<vmem>>, %arg10: memref<8x16xbf16, #tpu.memory_space<vmem>>, %arg11: memref<8x1xf32, #tpu.memory_space<vmem>>, %arg12: memref<8x1xf32, #tpu.memory_space<vmem>>, %arg13: memref<8x32xf32, #tpu.memory_space<vmem>>) attributes {dimension_semantics = [#tpu.dimension_semantics<parallel>, #tpu.dimension_semantics<parallel>, #tpu.dimension_semantics<arbitrary>], iteration_bounds = array<i64: 2, 2, 2>, scalar_prefetch = 0 : i64, scratch_operands = 4 : i64, tpu.core_type = #tpu.core_type<tc>, window_params = [{transform_indices = @transform_0, window_bounds = array<i64: 1, 8, 32>}, {transform_indices = @transform_1, window_bounds = array<i64: 1, 8, 32>}, {pipeline_mode = #tpu.pipeline_mode<synchronous>, transform_indices = @transform_2, window_bounds = array<i64: 32, 16>}, {pipeline_mode = #tpu.pipeline_mode<synchronous>, transform_indices = @transform_3, window_bounds = array<i64: 1, 16>}, {pipeline_mode = #tpu.pipeline_mode<synchronous>, transform_indices = @transform_4, window_bounds = array<i64: 32, 48>}, {pipeline_mode = #tpu.pipeline_mode<synchronous>, transform_indices = @transform_5, window_bounds = array<i64: 1, 48>}, {transform_indices = @transform_6, window_bounds = array<i64: 1, 8, 32>}]} {
    %c0_i32 = arith.constant 0 : i32
    %0 = arith.cmpi eq, %arg2, %c0_i32 : i32
    %1 = arith.extui %0 : i1 to i32
    %c0_i32_0 = arith.constant 0 : i32
    %2 = arith.cmpi ne, %1, %c0_i32_0 : i32
    scf.if %2 {
      %c0_26 = arith.constant 0 : index
      %c0_27 = arith.constant 0 : index
      %c0_28 = arith.constant 0 : index
      %43 = vector.load %arg3[%c0_26, %c0_27, %c0_28] : memref<1x8x32xf32, #tpu.memory_space<vmem>>, vector<1x8x32xf32>
      %44 = vector.shape_cast %43 : vector<1x8x32xf32> to vector<8x32xf32>
      %c0_29 = arith.constant 0 : index
      %c0_30 = arith.constant 0 : index
      %45 = vector.load %arg5[%c0_29, %c0_30] : memref<32x16xf32, #tpu.memory_space<vmem>>, vector<32x16xf32>
      %cst_31 = arith.constant dense<0.000000e+00> : vector<8x16xf32>
      %46 = tpu.matmul %44, %45, %cst_31 {dimension_numbers = #tpu.dot_dimension_numbers<[1], [0], [0], [1], [0, 0, 1, 1], [], []>} : vector<8x32xf32>, vector<32x16xf32>, vector<8x16xf32> -> vector<8x16xf32>
      %c0_32 = arith.constant 0 : index
      %c0_33 = arith.constant 0 : index
      %47 = vector.load %arg6[%c0_32, %c0_33] : memref<1x16xf32, #tpu.memory_space<vmem>>, vector<1x16xf32>
      %48 = vector.broadcast %47 : vector<1x16xf32> to vector<8x16xf32>
      %49 = arith.addf %46, %48 : vector<8x16xf32>
      %cst_34 = arith.constant 0.176776692 : f32
      %50 = vector.broadcast %cst_34 : f32 to vector<8x16xf32>
      %51 = arith.mulf %49, %50 : vector<8x16xf32>
      %52 = arith.truncf %51 : vector<8x16xf32> to vector<8x16xbf16>
      %c0_35 = arith.constant 0 : index
      %c0_36 = arith.constant 0 : index
      %53 = vector.load %arg10[%c0_35, %c0_36] : memref<8x16xbf16, #tpu.memory_space<vmem>>, vector<8x16xbf16>
      tpu.vector_store %arg10[%c0_35, %c0_36], %52 {strides = array<i32>} : memref<8x16xbf16, #tpu.memory_space<vmem>>, vector<8x16xbf16>,
      %cst_37 = arith.constant 0xFF800000 : f32
      %54 = vector.broadcast %cst_37 : f32 to vector<8x1xf32>
      %c0_38 = arith.constant 0 : index
      %c0_39 = arith.constant 0 : index
      %55 = vector.load %arg11[%c0_38, %c0_39] : memref<8x1xf32, #tpu.memory_space<vmem>>, vector<8x1xf32>
      tpu.vector_store %arg11[%c0_38, %c0_39], %54 {strides = array<i32>} : memref<8x1xf32, #tpu.memory_space<vmem>>, vector<8x1xf32>,
      %cst_40 = arith.constant 0.000000e+00 : f32
      %56 = vector.broadcast %cst_40 : f32 to vector<8x1xf32>
      %c0_41 = arith.constant 0 : index
      %c0_42 = arith.constant 0 : index
      %57 = vector.load %arg12[%c0_41, %c0_42] : memref<8x1xf32, #tpu.memory_space<vmem>>, vector<8x1xf32>
      tpu.vector_store %arg12[%c0_41, %c0_42], %56 {strides = array<i32>} : memref<8x1xf32, #tpu.memory_space<vmem>>, vector<8x1xf32>,
      %cst_43 = arith.constant 0.000000e+00 : f32
      %58 = vector.broadcast %cst_43 : f32 to vector<8x32xf32>
      %c0_44 = arith.constant 0 : index
      %c0_45 = arith.constant 0 : index
      %59 = vector.load %arg13[%c0_44, %c0_45] : memref<8x32xf32, #tpu.memory_space<vmem>>, vector<8x32xf32>
      tpu.vector_store %arg13[%c0_44, %c0_45], %58 {strides = array<i32>} : memref<8x32xf32, #tpu.memory_space<vmem>>, vector<8x32xf32>,
    } else {
    }
    %c0 = arith.constant 0 : index
    %c0_1 = arith.constant 0 : index
    %c0_2 = arith.constant 0 : index
    %3 = vector.load %arg4[%c0, %c0_1, %c0_2] : memref<1x8x32xf32, #tpu.memory_space<vmem>>, vector<1x8x32xf32>
    %4 = vector.shape_cast %3 : vector<1x8x32xf32> to vector<8x32xf32>
    %c0_3 = arith.constant 0 : index
    %c0_4 = arith.constant 0 : index
    %5 = vector.load %arg7[%c0_3, %c0_4] : memref<32x48xf32, #tpu.memory_space<vmem>>, vector<32x48xf32>
    %cst = arith.constant dense<0.000000e+00> : vector<8x48xf32>
    %6 = tpu.matmul %4, %5, %cst {dimension_numbers = #tpu.dot_dimension_numbers<[1], [0], [0], [1], [0, 0, 1, 1], [], []>} : vector<8x32xf32>, vector<32x48xf32>, vector<8x48xf32> -> vector<8x48xf32>
    %c0_5 = arith.constant 0 : index
    %c0_6 = arith.constant 0 : index
    %7 = vector.load %arg8[%c0_5, %c0_6] : memref<1x48xf32, #tpu.memory_space<vmem>>, vector<1x48xf32>
    %8 = vector.broadcast %7 : vector<1x48xf32> to vector<8x48xf32>
    %9 = arith.addf %6, %8 : vector<8x48xf32>
    %10 = vector.extract_strided_slice %9 {offsets = [0, 0], sizes = [8, 16], strides = [1, 1]} : vector<8x48xf32> to vector<8x16xf32>
    %11 = arith.truncf %10 : vector<8x16xf32> to vector<8x16xbf16>
    %12 = vector.extract_strided_slice %9 {offsets = [0, 16], sizes = [8, 32], strides = [1, 1]} : vector<8x48xf32> to vector<8x32xf32>
    %13 = arith.truncf %12 : vector<8x32xf32> to vector<8x32xbf16>
    %c0_7 = arith.constant 0 : index
    %c0_8 = arith.constant 0 : index
    %14 = vector.load %arg10[%c0_7, %c0_8] : memref<8x16xbf16, #tpu.memory_space<vmem>>, vector<8x16xbf16>
    %15 = tpu.transpose %11, [1, 0] : vector<8x16xbf16> -> vector<16x8xbf16>
    %cst_9 = arith.constant dense<0.000000e+00> : vector<8x8xf32>
    %16 = tpu.matmul %14, %15, %cst_9 {dimension_numbers = #tpu.dot_dimension_numbers<[1], [0], [0], [1], [0, 0, 1, 1], [], []>} : vector<8x16xbf16>, vector<16x8xbf16>, vector<8x8xf32> -> vector<8x8xf32>
    %c0_10 = arith.constant 0 : index
    %c0_11 = arith.constant 0 : index
    %17 = vector.load %arg11[%c0_10, %c0_11] : memref<8x1xf32, #tpu.memory_space<vmem>>, vector<8x1xf32>
    %cst_12 = arith.constant dense<0xFF800000> : vector<8xf32>
    %18 = vector.multi_reduction <maximumf>, %16, %cst_12 [1] : vector<8x8xf32> to vector<8xf32>
    %19 = vector.shape_cast %18 : vector<8xf32> to vector<8x1xf32>
    %20 = arith.maximumf %17, %19 : vector<8x1xf32>
    %21 = arith.subf %17, %20 : vector<8x1xf32>
    %22 = math.exp %21 : vector<8x1xf32>
    %23 = vector.broadcast %20 : vector<8x1xf32> to vector<8x8xf32>
    %24 = arith.subf %16, %23 : vector<8x8xf32>
    %25 = math.exp %24 : vector<8x8xf32>
    %c0_13 = arith.constant 0 : index
    %c0_14 = arith.constant 0 : index
    %26 = vector.load %arg12[%c0_13, %c0_14] : memref<8x1xf32, #tpu.memory_space<vmem>>, vector<8x1xf32>
    %27 = arith.mulf %22, %26 : vector<8x1xf32>
    %cst_15 = arith.constant dense<0.000000e+00> : vector<8xf32>
    %28 = vector.multi_reduction <add>, %25, %cst_15 [1] : vector<8x8xf32> to vector<8xf32>
    %29 = vector.shape_cast %28 : vector<8xf32> to vector<8x1xf32>
    %30 = arith.addf %27, %29 : vector<8x1xf32>
    %c0_16 = arith.constant 0 : index
    %c0_17 = arith.constant 0 : index
    %31 = vector.load %arg12[%c0_16, %c0_17] : memref<8x1xf32, #tpu.memory_space<vmem>>, vector<8x1xf32>
    tpu.vector_store %arg12[%c0_16, %c0_17], %30 {strides = array<i32>} : memref<8x1xf32, #tpu.memory_space<vmem>>, vector<8x1xf32>,
    %c0_18 = arith.constant 0 : index
    %c0_19 = arith.constant 0 : index
    %32 = vector.load %arg13[%c0_18, %c0_19] : memref<8x32xf32, #tpu.memory_space<vmem>>, vector<8x32xf32>
    %33 = vector.broadcast %22 : vector<8x1xf32> to vector<8x32xf32>
    %34 = arith.mulf %33, %32 : vector<8x32xf32>
    %35 = arith.truncf %25 : vector<8x8xf32> to vector<8x8xbf16>
    %cst_20 = arith.constant dense<0.000000e+00> : vector<8x32xf32>
    %36 = tpu.matmul %35, %13, %cst_20 {dimension_numbers = #tpu.dot_dimension_numbers<[1], [0], [0], [1], [0, 0, 1, 1], [], []>} : vector<8x8xbf16>, vector<8x32xbf16>, vector<8x32xf32> -> vector<8x32xf32>
    %37 = arith.addf %34, %36 : vector<8x32xf32>
    %c0_21 = arith.constant 0 : index
    %c0_22 = arith.constant 0 : index
    %38 = vector.load %arg13[%c0_21, %c0_22] : memref<8x32xf32, #tpu.memory_space<vmem>>, vector<8x32xf32>
    tpu.vector_store %arg13[%c0_21, %c0_22], %37 {strides = array<i32>} : memref<8x32xf32, #tpu.memory_space<vmem>>, vector<8x32xf32>,
    %c0_23 = arith.constant 0 : index
    %c0_24 = arith.constant 0 : index
    %39 = vector.load %arg11[%c0_23, %c0_24] : memref<8x1xf32, #tpu.memory_space<vmem>>, vector<8x1xf32>
    tpu.vector_store %arg11[%c0_23, %c0_24], %20 {strides = array<i32>} : memref<8x1xf32, #tpu.memory_space<vmem>>, vector<8x1xf32>,
    %c1_i32 = arith.constant 1 : i32
    %40 = arith.cmpi eq, %arg2, %c1_i32 : i32
    %41 = arith.extui %40 : i1 to i32
    %c0_i32_25 = arith.constant 0 : i32
    %42 = arith.cmpi ne, %41, %c0_i32_25 : i32
    scf.if %42 {
      %c0_26 = arith.constant 0 : index
      %c0_27 = arith.constant 0 : index
      %43 = vector.load %arg12[%c0_26, %c0_27] : memref<8x1xf32, #tpu.memory_space<vmem>>, vector<8x1xf32>
      %44 = tpu.reciprocal %43 {approx = true} : vector<8x1xf32> -> vector<8x1xf32>
      %c0_28 = arith.constant 0 : index
      %c0_29 = arith.constant 0 : index
      %45 = vector.load %arg13[%c0_28, %c0_29] : memref<8x32xf32, #tpu.memory_space<vmem>>, vector<8x32xf32>
      %46 = vector.broadcast %44 : vector<8x1xf32> to vector<8x32xf32>
      %47 = arith.mulf %45, %46 : vector<8x32xf32>
      %c0_30 = arith.constant 0 : index
      %c0_31 = arith.constant 0 : index
      %c0_32 = arith.constant 0 : index
      %48 = vector.load %arg9[%c0_30, %c0_31, %c0_32] : memref<1x8x32xf32, #tpu.memory_space<vmem>>, vector<1x8x32xf32>
      %49 = vector.shape_cast %48 : vector<1x8x32xf32> to vector<8x32xf32>
      %50 = vector.shape_cast %47 : vector<8x32xf32> to vector<1x8x32xf32>
      tpu.vector_store %arg9[%c0_30, %c0_31, %c0_32], %50 {strides = array<i32>} : memref<1x8x32xf32, #tpu.memory_space<vmem>>, vector<1x8x32xf32>,
    } else {
    }
    return
  }
  func.func @transform_0(%arg0: i32, %arg1: i32, %arg2: i32) -> (i32, i32, i32) {
    %c0_i32 = arith.constant 0 : i32
    %c0_i32_0 = arith.constant 0 : i32
    return %arg0, %arg1, %c0_i32 : i32, i32, i32
  }
  func.func @transform_1(%arg0: i32, %arg1: i32, %arg2: i32) -> (i32, i32, i32) {
    %c0_i32 = arith.constant 0 : i32
    %c0_i32_0 = arith.constant 0 : i32
    return %arg0, %arg2, %c0_i32 : i32, i32, i32
  }
  func.func @transform_2(%arg0: i32, %arg1: i32, %arg2: i32) -> (i32, i32) {
    %c0_i32 = arith.constant 0 : i32
    %c0_i32_0 = arith.constant 0 : i32
    %c0_i32_1 = arith.constant 0 : i32
    return %c0_i32, %c0_i32_0 : i32, i32
  }
  func.func @transform_3(%arg0: i32, %arg1: i32, %arg2: i32) -> (i32, i32) {
    %c0_i32 = arith.constant 0 : i32
    %c0_i32_0 = arith.constant 0 : i32
    %c0_i32_1 = arith.constant 0 : i32
    return %c0_i32, %c0_i32_0 : i32, i32
  }
  func.func @transform_4(%arg0: i32, %arg1: i32, %arg2: i32) -> (i32, i32) {
    %c0_i32 = arith.constant 0 : i32
    %c0_i32_0 = arith.constant 0 : i32
    %c0_i32_1 = arith.constant 0 : i32
    return %c0_i32, %c0_i32_0 : i32, i32
  }
  func.func @transform_5(%arg0: i32, %arg1: i32, %arg2: i32) -> (i32, i32) {
    %c0_i32 = arith.constant 0 : i32
    %c0_i32_0 = arith.constant 0 : i32
    %c0_i32_1 = arith.constant 0 : i32
    return %c0_i32, %c0_i32_0 : i32, i32
  }
  func.func @transform_6(%arg0: i32, %arg1: i32, %arg2: i32) -> (i32, i32, i32) {
    %c0_i32 = arith.constant 0 : i32
    %c0_i32_0 = arith.constant 0 : i32
    return %arg0, %arg1, %c0_i32 : i32, i32, i32
  }
}

</mosaic_0001>

<llo_original>
// kernel: tpu_custom_call.1
$region0: #{tpu_custom_call.1}
  #allocation0 [shape = 'u32[]', space=smem, size = 0x4, offset = 0x4, fixed_abs, tag = 'smem constant byte address 0x4 - core index']
  #allocation1 [shape = 'u32[144,128]{1,0:T(1,128)}', space=vmem, size = 0x12000, scoped, tag = 'internal scratch']
  #allocation2 [shape = 'bf16[8,16]{1,0:T(8,128)(2,1)}', space=vmem, size = 0x800, scoped, tag = 'scratch operand']
  #allocation3 [shape = 'f32[8,1]{1,0:T(8,128)}', space=vmem, size = 0x1000, scoped, tag = 'scratch operand']
  #allocation4 [shape = 'f32[8,1]{1,0:T(8,128)}', space=vmem, size = 0x1000, scoped, tag = 'scratch operand']
  #allocation5 [shape = 'f32[8,32]{1,0:T(8,128)}', space=vmem, size = 0x1000, scoped, tag = 'scratch operand']
  %s0 = inlined_call_operand.vmem [shape: f32[2,16,32], index: 0, kind: input, shape index: {}]
  %s1 = inlined_call_operand.hbm [shape: f32[2,16,32], index: 1, kind: input, shape index: {}]
  %s2 = inlined_call_operand.vmem [shape: f32[32,16], index: 2, kind: input, shape index: {}]
  %s3 = inlined_call_operand.vmem [shape: f32[1,16], index: 3, kind: input, shape index: {}]
  %s4 = inlined_call_operand.hbm [shape: f32[32,48], index: 4, kind: input, shape index: {}]
  %s5 = inlined_call_operand.vmem [shape: f32[1,48], index: 5, kind: input, shape index: {}]
  %s6 = inlined_call_operand.hbm [shape: f32[2,16,32], index: 6, kind: output, shape index: {}]
  %s7 = sld [smem:[#allocation0]]
  $region73: #{tpu_custom_call.1} parent=0
    _
  %s9 = ssub.s32 1, %s7
  %s10 = scalar_select 0, %s9, %s7
  $region1: #{tpu_custom_call.1} parent=0
    #allocation6 [shape = 'u8[8192]{0}', space=vmem, size = 0x2000, scoped, tag = 'input window, operand 1']
    #allocation7 [shape = 's32[2]{0}', space=sflag, size = 0x8, scoped, tag = 'scoped memory for tpu_custom_call.1']
    #allocation8 [shape = 's32[2]{0}', space=sflag, size = 0x8, scoped, tag = 'scoped memory for tpu_custom_call.1']
    #allocation9 [shape = 'u8[16384]{0}', space=vmem, size = 0x4000, scoped, tag = 'input window, operand 4, single buffered']
    #allocation10 [shape = 's32[1]{0}', space=sflag, size = 0x4, scoped, tag = 'scoped memory for tpu_custom_call.1']
    #allocation11 [shape = 'u8[8192]{0}', space=vmem, size = 0x2000, scoped, tag = 'output window, operand 0']
    %11 = vsyncpa [#allocation7], 0
    %s12 = scalar_lea.sflag [#allocation7], 1
    %13 = vsyncpa %s12, 0
    %14 = vsyncpa [#allocation10], 0
    %15 = vsyncpa [#allocation8], 0
    %s16 = scalar_lea.sflag [#allocation8], 1
    %17 = vsyncpa %s16, 0
    loop: start=0, step=1, limit=10
    $region2: #{tpu_custom_call.1} parent=1 // loop_pre_header
      _
    $region3: #{tpu_custom_call.1} parent=1 // loop_header
      %s19 = sphi 0, %s23
      %p20 = scmp.ge.s32.totalorder %s19, 10
      %s26 = sphi 0, %s45
      %s27 = sphi 0, %s41
      %s28 = sphi 0, %s37
      %s29 = sphi 0, %s26
      %s30 = sphi 0, %s27
      %s31 = sphi 0, %s28
      %s32 = sphi 0, %s29
      %s33 = sphi 0, %s30
      %s34 = sphi 0, %s31
      %s50 = sphi 0, %s52
      %s53 = sphi 0, %s50
      %s54 = sphi 0, %s53
      %s70 = sphi 0, %s54
      %s78 = sphi 0, %s80
      %s81 = sphi 0, %s78
      %s82 = sphi 0, %s81
      %s98 = sphi 0, %s82
      %s102 = sphi 0, %s102
      %s104 = sphi 0, %s102
      %s105 = sphi 0, %s104
      %s119 = sphi 0, %s105
      %s123 = sphi 0, %s123
      %s125 = sphi 0, %s123
      %s126 = sphi 0, %s125
      %s140 = sphi 0, %s126
      %s144 = sphi 0, %s144
      %s146 = sphi 0, %s144
      %s147 = sphi 0, %s146
      %s161 = sphi 0, %s147
      %s165 = sphi 0, %s165
      %s167 = sphi 0, %s165
      %s168 = sphi 0, %s167
      %s182 = sphi 0, %s168
      %s190 = sphi 0, %s192
      %s193 = sphi 0, %s190
      %s194 = sphi 0, %s193
      %s210 = sphi 0, %s194
    $region4: #{tpu_custom_call.1} parent=1 // loop_header_branch
      %22 = sbr.rel (%p20) target = $region8
    $region5: #{tpu_custom_call.1} parent=1 // loop_body
      %s24 = ssub.s32 %s19, 1
      %s25 = ssub.s32 %s19, 2
      %s35 = sadd.s32 1, %s28
      %p36 = scmp.ge.s32.totalorder %s35, 2
      %s37 = scalar_select %p36, 0, %s35
      %s38 = sadd.s32 1, %s27
      %s39 = scalar_select %p36, %s38, %s27
      %p40 = scmp.ge.s32.totalorder %s39, 2
      %s41 = scalar_select %p40, 0, %s39
      %s42 = sadd.s32 1, %s26
      %s43 = scalar_select %p40, %s42, %s26
      %p44 = scmp.ge.s32.totalorder %s43, 2
      %s45 = scalar_select %p44, 0, %s43
      %s46 = ssub.s32 %s26, %s45
      %s47 = ssub.s32 %s27, %s41
      %s48 = sor.u32 %s46, %s47
      %p49 = scmp.eq.s32.totalorder %s48, 0
      %s51 = sadd.s32 %s50, 1
      %s52 = scalar_select %p49, %s50, %s51
      %p55 = pneg %p49
      %p56 = scmp.eq.s32.totalorder %s19, 7
      %p57 = por %p55, %p56
      %p58 = scmp.ne.s32.totalorder %s50, %s53
      %p59 = scmp.eq.s32.totalorder %s19, 0
      %p60 = por %p58, %p59
      %p61 = scmp.ne.s32.totalorder %s50, %s53
      %p62 = scmp.eq.s32.totalorder %s24, 7
      %p63 = por %p61, %p62
      %p64 = scmp.ne.s32.totalorder %s53, %s54
      %p65 = scmp.eq.s32.totalorder %s24, 0
      %p66 = por %p64, %p65
      %p67 = scmp.ne.s32.totalorder %s53, %s54
      %p68 = scmp.eq.s32.totalorder %s25, 7
      %p69 = por %p67, %p68
      %p71 = scmp.ne.s32.totalorder %s54, %s70
      %p72 = scmp.eq.s32.totalorder %s25, 0
      %p73 = por %p71, %p72
      %s74 = ssub.s32 %s26, %s45
      %s75 = ssub.s32 %s28, %s37
      %s76 = sor.u32 %s74, %s75
      %p77 = scmp.eq.s32.totalorder %s76, 0
      %s79 = sadd.s32 %s78, 1
      %s80 = scalar_select %p77, %s78, %s79
      %p83 = pneg %p77
      %p84 = scmp.eq.s32.totalorder %s19, 7
      %p85 = por %p83, %p84
      %p86 = scmp.ne.s32.totalorder %s78, %s81
      %p87 = scmp.eq.s32.totalorder %s19, 0
      %p88 = por %p86, %p87
      %p89 = scmp.ne.s32.totalorder %s78, %s81
      %p90 = scmp.eq.s32.totalorder %s24, 7
      %p91 = por %p89, %p90
      %p92 = scmp.ne.s32.totalorder %s81, %s82
      %p93 = scmp.eq.s32.totalorder %s24, 0
      %p94 = por %p92, %p93
      %p95 = scmp.ne.s32.totalorder %s81, %s82
      %p96 = scmp.eq.s32.totalorder %s25, 7
      %p97 = por %p95, %p96
      %p99 = scmp.ne.s32.totalorder %s82, %s98
      %p100 = scmp.eq.s32.totalorder %s25, 0
      %p101 = por %p99, %p100
      %s103 = sadd.s32 %s102, 1
      %p106 = scmp.eq.s32.totalorder %s19, 7
      %p107 = scmp.ne.s32.totalorder %s102, %s104
      %p108 = scmp.eq.s32.totalorder %s19, 0
      %p109 = por %p107, %p108
      %p110 = scmp.ne.s32.totalorder %s102, %s104
      %p111 = scmp.eq.s32.totalorder %s24, 7
      %p112 = por %p110, %p111
      %p113 = scmp.ne.s32.totalorder %s104, %s105
      %p114 = scmp.eq.s32.totalorder %s24, 0
      %p115 = por %p113, %p114
      %p116 = scmp.ne.s32.totalorder %s104, %s105
      %p117 = scmp.eq.s32.totalorder %s25, 7
      %p118 = por %p116, %p117
      %p120 = scmp.ne.s32.totalorder %s105, %s119
      %p121 = scmp.eq.s32.totalorder %s25, 0
      %p122 = por %p120, %p121
      %s124 = sadd.s32 %s123, 1
      %p127 = scmp.eq.s32.totalorder %s19, 7
      %p128 = scmp.ne.s32.totalorder %s123, %s125
      %p129 = scmp.eq.s32.totalorder %s19, 0
      %p130 = por %p128, %p129
      %p131 = scmp.ne.s32.totalorder %s123, %s125
      %p132 = scmp.eq.s32.totalorder %s24, 7
      %p133 = por %p131, %p132
      %p134 = scmp.ne.s32.totalorder %s125, %s126
      %p135 = scmp.eq.s32.totalorder %s24, 0
      %p136 = por %p134, %p135
      %p137 = scmp.ne.s32.totalorder %s125, %s126
      %p138 = scmp.eq.s32.totalorder %s25, 7
      %p139 = por %p137, %p138
      %p141 = scmp.ne.s32.totalorder %s126, %s140
      %p142 = scmp.eq.s32.totalorder %s25, 0
      %p143 = por %p141, %p142
      %s145 = sadd.s32 %s144, 1
      %p148 = scmp.eq.s32.totalorder %s19, 7
      %p149 = scmp.ne.s32.totalorder %s144, %s146
      %p150 = scmp.eq.s32.totalorder %s19, 0
      %p151 = por %p149, %p150
      %p152 = scmp.ne.s32.totalorder %s144, %s146
      %p153 = scmp.eq.s32.totalorder %s24, 7
      %p154 = por %p152, %p153
      %p155 = scmp.ne.s32.totalorder %s146, %s147
      %p156 = scmp.eq.s32.totalorder %s24, 0
      %p157 = por %p155, %p156
      %p158 = scmp.ne.s32.totalorder %s146, %s147
      %p159 = scmp.eq.s32.totalorder %s25, 7
      %p160 = por %p158, %p159
      %p162 = scmp.ne.s32.totalorder %s147, %s161
      %p163 = scmp.eq.s32.totalorder %s25, 0
      %p164 = por %p162, %p163
      %s166 = sadd.s32 %s165, 1
      %p169 = scmp.eq.s32.totalorder %s19, 7
      %p170 = scmp.ne.s32.totalorder %s165, %s167
      %p171 = scmp.eq.s32.totalorder %s19, 0
      %p172 = por %p170, %p171
      %p173 = scmp.ne.s32.totalorder %s165, %s167
      %p174 = scmp.eq.s32.totalorder %s24, 7
      %p175 = por %p173, %p174
      %p176 = scmp.ne.s32.totalorder %s167, %s168
      %p177 = scmp.eq.s32.totalorder %s24, 0
      %p178 = por %p176, %p177
      %p179 = scmp.ne.s32.totalorder %s167, %s168
      %p180 = scmp.eq.s32.totalorder %s25, 7
      %p181 = por %p179, %p180
      %p183 = scmp.ne.s32.totalorder %s168, %s182
      %p184 = scmp.eq.s32.totalorder %s25, 0
      %p185 = por %p183, %p184
      %s186 = ssub.s32 %s26, %s45
      %s187 = ssub.s32 %s27, %s41
      %s188 = sor.u32 %s186, %s187
      %p189 = scmp.eq.s32.totalorder %s188, 0
      %s191 = sadd.s32 %s190, 1
      %s192 = scalar_select %p189, %s190, %s191
      %p195 = pneg %p189
      %p196 = scmp.eq.s32.totalorder %s19, 7
      %p197 = por %p195, %p196
      %p198 = scmp.ne.s32.totalorder %s190, %s193
      %p199 = scmp.eq.s32.totalorder %s19, 0
      %p200 = por %p198, %p199
      %p201 = scmp.ne.s32.totalorder %s190, %s193
      %p202 = scmp.eq.s32.totalorder %s24, 7
      %p203 = por %p201, %p202
      %p204 = scmp.ne.s32.totalorder %s193, %s194
      %p205 = scmp.eq.s32.totalorder %s24, 0
      %p206 = por %p204, %p205
      %p207 = scmp.ne.s32.totalorder %s193, %s194
      %p208 = scmp.eq.s32.totalorder %s25, 7
      %p209 = por %p207, %p208
      %p211 = scmp.ne.s32.totalorder %s194, %s210
      %p212 = scmp.eq.s32.totalorder %s25, 0
      %p213 = por %p211, %p212
      %p214 = scmp.le.s32.totalorder 1, %s19
      %p215 = scmp.lt.s32.totalorder %s19, 9
      %p216 = pnand %p214, %p215
      %p217 = pneg %p216
      // Predicated region
      $region9: #{tpu_custom_call.1} parent=5 // pred_check
        _
      $region10: #{tpu_custom_call.1} parent=5 // pred_check_branch
        %219 = sbr.rel (%p216) target = $region12
      $region11: #{tpu_custom_call.1} parent=5 // pred_region
        %s220 = ssub.s32 %s19, 1
        // Predicated region
        $region13: #{tpu_custom_call.1} parent=11 // pred_check
          %p221 = pneg %p115
        $region14: #{tpu_custom_call.1} parent=11 // pred_check_branch
          %223 = sbr.rel (%p221) target = $region16
        $region15: #{tpu_custom_call.1} parent=11 // pred_region
          _
        $region16: #{tpu_custom_call.1} parent=11 // pred_fallthru
          _
        // Predicated region
        $region17: #{tpu_custom_call.1} parent=11 // pred_check
          %p224 = pneg %p136
        $region18: #{tpu_custom_call.1} parent=11 // pred_check_branch
          %226 = sbr.rel (%p224) target = $region20
        $region19: #{tpu_custom_call.1} parent=11 // pred_region
          _
        $region20: #{tpu_custom_call.1} parent=11 // pred_fallthru
          _
        // Predicated region
        $region21: #{tpu_custom_call.1} parent=11 // pred_check
          %p227 = pneg %p157
        $region22: #{tpu_custom_call.1} parent=11 // pred_check_branch
          %229 = sbr.rel (%p227) target = $region24
        $region23: #{tpu_custom_call.1} parent=11 // pred_region
          %s231 = ssub.s32 512, 512
          %232 = vsyncadd [#allocation10], %s231
          %s233 = sshll.u32 [#allocation9], 4
          %s234 = int_to_ptr.vmem [resolvable:$true] %s233
          %239 = dma.hbm_to_vmem [thread:$0]  %s4, 512, %s234, [#allocation10], 128, 128, 8
        $region24: #{tpu_custom_call.1} parent=11 // pred_fallthru
          _
        // Predicated region
        $region25: #{tpu_custom_call.1} parent=11 // pred_check
          %p240 = pneg %p178
        $region26: #{tpu_custom_call.1} parent=11 // pred_check_branch
          %242 = sbr.rel (%p240) target = $region28
        $region27: #{tpu_custom_call.1} parent=11 // pred_region
          _
        $region28: #{tpu_custom_call.1} parent=11 // pred_fallthru
          _
      $region12: #{tpu_custom_call.1} parent=5 // pred_fallthru
        _
      %p243 = scmp.lt.s32.totalorder %s19, 8
      // Predicated region
      $region29: #{tpu_custom_call.1} parent=5 // pred_check
        %p244 = pneg %p243
      $region30: #{tpu_custom_call.1} parent=5 // pred_check_branch
        %246 = sbr.rel (%p244) target = $region32
      $region31: #{tpu_custom_call.1} parent=5 // pred_region
        // Predicated region
        $region33: #{tpu_custom_call.1} parent=31 // pred_check
          %p247 = pneg %p60
        $region34: #{tpu_custom_call.1} parent=31 // pred_check_branch
          %249 = sbr.rel (%p247) target = $region36
        $region35: #{tpu_custom_call.1} parent=31 // pred_region
          %p250 = scmp.lt.s32.totalorder %s26, 1
          %s251 = scalar_select %p250, %s26, 1
          %p252 = scmp.lt.s32.totalorder %s27, 1
          %s253 = scalar_select %p252, %s27, 1
          %s254 = smul.addr %s251, 2
          %s255 = sadd.s32 %s253, %s254
          %s256 = smul.addr %s255, 8
          %s257 = scalar_lea.vmem %s0, %s256
        $region36: #{tpu_custom_call.1} parent=31 // pred_fallthru
          _
        // Predicated region
        $region37: #{tpu_custom_call.1} parent=31 // pred_check
          %p258 = pneg %p88
        $region38: #{tpu_custom_call.1} parent=31 // pred_check_branch
          %260 = sbr.rel (%p258) target = $region40
        $region39: #{tpu_custom_call.1} parent=31 // pred_region
          %s261 = sand.u32 %s78, 1
          %s262 = scalar_lea.sflag [#allocation7], %s261
          %s263 = sand.u32 %s78, 1
          %s264 = smul.addr %s263, 8
          %s265 = scalar_lea.vmem [#allocation6], %s264
          %s267 = ssub.s32 128, 128
          %268 = vsyncadd %s262, %s267
          %s269 = smul.addr %s26, 2
          %s270 = sadd.s32 %s28, %s269
          %s271 = smul.addr %s270, 128
          %s272 = scalar_lea.hbm %s1, %s271
          %s274 = sshll.u32 %s265, 4
          %s275 = int_to_ptr.vmem [resolvable:$true] %s274
          %277 = dma.hbm_to_vmem [thread:$0]  %s272, 128, %s275, %s262
        $region40: #{tpu_custom_call.1} parent=31 // pred_fallthru
          _
      $region32: #{tpu_custom_call.1} parent=5 // pred_fallthru
        _
      %p278 = scmp.le.s32.totalorder 1, %s19
      %p279 = scmp.lt.s32.totalorder %s19, 9
      %p280 = pnand %p278, %p279
      %p281 = pneg %p280
      // Predicated region
      $region41: #{tpu_custom_call.1} parent=5 // pred_check
        _
      $region42: #{tpu_custom_call.1} parent=5 // pred_check_branch
        %283 = sbr.rel (%p280) target = $region44
      $region43: #{tpu_custom_call.1} parent=5 // pred_region
        %s284 = ssub.s32 %s19, 1
        %s285 = sand.u32 %s81, 1
        %s286 = scalar_lea.sflag [#allocation7], %s285
        %s287 = sand.u32 %s81, 1
        %s288 = smul.addr %s287, 8
        %s289 = scalar_lea.vmem [#allocation6], %s288
        // Predicated region
        $region45: #{tpu_custom_call.1} parent=43 // pred_check
          %p290 = pneg %p94
        $region46: #{tpu_custom_call.1} parent=43 // pred_check_branch
          %292 = sbr.rel (%p290) target = $region48
        $region47: #{tpu_custom_call.1} parent=43 // pred_region
          %293 = dma.done %s286, 128
        $region48: #{tpu_custom_call.1} parent=43 // pred_fallthru
          _
        // Predicated region
        $region49: #{tpu_custom_call.1} parent=43 // pred_check
          %p294 = pneg %p157
        $region50: #{tpu_custom_call.1} parent=43 // pred_check_branch
          %296 = sbr.rel (%p294) target = $region52
        $region51: #{tpu_custom_call.1} parent=43 // pred_region
          %297 = dma.done [#allocation10], 512
        $region52: #{tpu_custom_call.1} parent=43 // pred_fallthru
          _
        %p298 = scmp.lt.s32.totalorder %s29, 1
        %s299 = scalar_select %p298, %s29, 1
        %p300 = scmp.lt.s32.totalorder %s30, 1
        %s301 = scalar_select %p300, %s30, 1
        %s302 = smul.addr %s299, 2
        %s303 = sadd.s32 %s301, %s302
        %s304 = smul.addr %s303, 8
        %s305 = scalar_lea.vmem %s0, %s304
        %p306 = pneg %p66
        %p307 = pneg %p63
        %s308 = sand.u32 %s81, 1
        %s309 = scalar_lea.sflag [#allocation7], %s308
        %s310 = sand.u32 %s81, 1
        %s311 = smul.addr %s310, 8
        %s312 = scalar_lea.vmem [#allocation6], %s311
        %p313 = pneg %p94
        %p314 = pneg %p91
        %p315 = pneg %p115
        %p316 = pneg %p112
        %p317 = pneg %p136
        %p318 = pneg %p133
        %p319 = pneg %p157
        %p320 = pneg %p154
        %p321 = pneg %p178
        %p322 = pneg %p175
        %p323 = pneg %p206
        %p324 = pneg %p203
        %s325 = sand.u32 %s193, 1
        %s326 = scalar_lea.sflag [#allocation8], %s325
        %s327 = sand.u32 %s193, 1
        %s328 = smul.addr %s327, 8
        %s329 = scalar_lea.vmem [#allocation11], %s328
        %p330 = scmp.lt.s32.totalorder %s29, 1
        %s331 = scalar_select %p330, %s29, 1
        %p332 = scmp.lt.s32.totalorder %s30, 1
        %s333 = scalar_select %p332, %s30, 1
        %s334 = smul.addr %s331, 2
        %s335 = sadd.s32 %s333, %s334
        %s336 = smul.addr %s335, 8
        %s337 = scalar_lea.vmem %s0, %s336
        %p339 = scmp.eq.s32.totalorder %s31, 0
        // Predicated region
        $region53: #{tpu_custom_call.1} parent=43 // pred_check
          %p340 = pneg %p339
        $region54: #{tpu_custom_call.1} parent=43 // pred_check_branch
          %342 = sbr.rel (%p340) target = $region56
        $region55: #{tpu_custom_call.1} parent=43 // pred_region
          %v343 = vld [vmem:[%s337] sm:$0xff]
          %v344 = vld [vmem:[%s2] sm:$0xff]
          %v345 = vld [vmem:[%s2 + $0x8] sm:$0xff]
          %v346 = vld [vmem:[%s2 + $0x10] sm:$0xff]
          %v347 = vld [vmem:[%s2 + $0x18] sm:$0xff]
          %v348 = vld [vmem:[%s3] sm:$0x1]
          %v350 = vlaneseq
          %v351 = vshrl.u32 %v350, 7
          %v352 = vsub.s32 0, %v351
          %v353 = vrot.slane %v348, %v352
          %vm355 = vcmask 261120
          %v357 = vsel %vm355, %v343, 0
          %359 = vmatprep.subr.mxu0 0.0
          %360 = vmatpush1.msra.mxu0 0.0
          %361 = vmatprep.subr.mxu0 0.0
          %362 = vmatpush1.msra.mxu0 0.0
          %363 = vmatprep.subr.mxu0 0.0
          %364 = vmatpush1.msra.mxu0 0.0
          %365 = vmatprep.subr.mxu0 0.0
          %366 = vmatpush1.msra.mxu0 0.0
          %367 = vmatprep.subr.mxu0 0.0
          %368 = vmatpush1.msra.mxu0 0.0
          %369 = vmatprep.subr.mxu0 0.0
          %370 = vmatpush1.msra.mxu0 0.0
          %371 = vmatprep.subr.mxu0 0.0
          %372 = vmatpush1.msra.mxu0 0.0
          %373 = vmatprep.subr.mxu0 0.0
          %374 = vmatpush1.msra.mxu0 0.0
          %375 = vmatprep.subr.mxu0 0.0
          %376 = vmatpush1.msra.mxu0 0.0
          %377 = vmatprep.subr.mxu0 0.0
          %378 = vmatpush1.msra.mxu0 0.0
          %379 = vmatprep.subr.mxu0 0.0
          %380 = vmatpush1.msra.mxu0 0.0
          %381 = vmatprep.subr.mxu0 0.0
          %382 = vmatpush1.msra.mxu0 0.0
          %383 = vmatprep.subr.mxu0 0.0
          %384 = vmatpush1.msra.mxu0 %v347
          %385 = vmatprep.subr.mxu0 0.0
          %386 = vmatpush1.msra.mxu0 %v346
          %387 = vmatprep.subr.mxu0 0.0
          %388 = vmatpush1.msra.mxu0 %v345
          %389 = vmatprep.subr.mxu0 0.0
          %390 = vmatpush1.msra.mxu0 %v344
          %391 = vmatprep.subr.mxu0 0.0
          %392 = vmatpush2.msra.mxu0 0.0
          %393 = vmatprep.subr.mxu0 0.0
          %394 = vmatpush2.msra.mxu0 0.0
          %395 = vmatprep.subr.mxu0 0.0
          %396 = vmatpush2.msra.mxu0 0.0
          %397 = vmatprep.subr.mxu0 0.0
          %398 = vmatpush2.msra.mxu0 0.0
          %399 = vmatprep.subr.mxu0 0.0
          %400 = vmatpush2.msra.mxu0 0.0
          %401 = vmatprep.subr.mxu0 0.0
          %402 = vmatpush2.msra.mxu0 0.0
          %403 = vmatprep.subr.mxu0 0.0
          %404 = vmatpush2.msra.mxu0 0.0
          %405 = vmatprep.subr.mxu0 0.0
          %406 = vmatpush2.msra.mxu0 0.0
          %407 = vmatprep.subr.mxu0 0.0
          %408 = vmatpush2.msra.mxu0 0.0
          %409 = vmatprep.subr.mxu0 0.0
          %410 = vmatpush2.msra.mxu0 0.0
          %411 = vmatprep.subr.mxu0 0.0
          %412 = vmatpush2.msra.mxu0 0.0
          %413 = vmatprep.subr.mxu0 0.0
          %414 = vmatpush2.msra.mxu0 0.0
          %415 = vmatprep.subr.mxu0 0.0
          %416 = vmatpush2.msra.mxu0 0.0
          %417 = vmatprep.subr.mxu0 0.0
          %418 = vmatpush2.msra.mxu0 0.0
          %419 = vmatprep.subr.mxu0 0.0
          %420 = vmatpush2.msra.mxu0 0.0
          %421 = vmatprep.subr.mxu0 0.0
          %422 = vmatpush2.msra.mxu0 0.0
          %423 = vmatprep.mubr.f32.mxu0 0.0
          %424 = vmatmul.mubr.f32.gmra.mxu0 %v357
          %v425 = vpop.f32.mrf.mxu0
          %v426 = vadd.f32 %v353, %v425
          %v427 = vpop.f32.mrf.mxu0
          %428 = vdwg.mxu0
          %v429 = vmul.f32 %v426, 0.17677669
          %v430 = vpack.c.bf16 %v429, %v429
          %vm431 = vcmask 125952
          %432 = vst.msk [vmem:[#allocation2] sm:$0xf] %vm431, %v430
          %vm433 = vcmask 7168
          %434 = vst.msk [vmem:[#allocation3] sm:$0xff] %vm433, -inf
          %435 = vst.msk [vmem:[#allocation4] sm:$0xff] %vm433, 0.0
          %436 = vst.msk [vmem:[#allocation5] sm:$0xff] %vm355, 0.0
        $region56: #{tpu_custom_call.1} parent=43 // pred_fallthru
          _
        %v437 = vld [vmem:[%s289] sm:$0xff]
        %v438 = vld [vmem:[#allocation9] sm:$0xff]
        %v439 = vld [vmem:[#allocation9 + $0x8] sm:$0xff]
        %v440 = vld [vmem:[#allocation9 + $0x10] sm:$0xff]
        %v441 = vld [vmem:[#allocation9 + $0x18] sm:$0xff]
        %v442 = vld [vmem:[%s5] sm:$0x1]
        %v444 = vlaneseq
        %v445 = vshrl.u32 %v444, 7
        %v446 = vsub.s32 0, %v445
        %v447 = vrot.slane %v442, %v446
        %vm449 = vcmask 261120
        %v451 = vsel %vm449, %v437, 0
        %453 = vmatprep.subr.mxu0 0.0
        %454 = vmatpush1.msra.mxu0 0.0
        %455 = vmatprep.subr.mxu0 0.0
        %456 = vmatpush1.msra.mxu0 0.0
        %457 = vmatprep.subr.mxu0 0.0
        %458 = vmatpush1.msra.mxu0 0.0
        %459 = vmatprep.subr.mxu0 0.0
        %460 = vmatpush1.msra.mxu0 0.0
        %461 = vmatprep.subr.mxu0 0.0
        %462 = vmatpush1.msra.mxu0 0.0
        %463 = vmatprep.subr.mxu0 0.0
        %464 = vmatpush1.msra.mxu0 0.0
        %465 = vmatprep.subr.mxu0 0.0
        %466 = vmatpush1.msra.mxu0 0.0
        %467 = vmatprep.subr.mxu0 0.0
        %468 = vmatpush1.msra.mxu0 0.0
        %469 = vmatprep.subr.mxu0 0.0
        %470 = vmatpush1.msra.mxu0 0.0
        %471 = vmatprep.subr.mxu0 0.0
        %472 = vmatpush1.msra.mxu0 0.0
        %473 = vmatprep.subr.mxu0 0.0
        %474 = vmatpush1.msra.mxu0 0.0
        %475 = vmatprep.subr.mxu0 0.0
        %476 = vmatpush1.msra.mxu0 0.0
        %477 = vmatprep.subr.mxu0 0.0
        %478 = vmatpush1.msra.mxu0 %v441
        %479 = vmatprep.subr.mxu0 0.0
        %480 = vmatpush1.msra.mxu0 %v440
        %481 = vmatprep.subr.mxu0 0.0
        %482 = vmatpush1.msra.mxu0 %v439
        %483 = vmatprep.subr.mxu0 0.0
        %484 = vmatpush1.msra.mxu0 %v438
        %485 = vmatprep.subr.mxu0 0.0
        %486 = vmatpush2.msra.mxu0 0.0
        %487 = vmatprep.subr.mxu0 0.0
        %488 = vmatpush2.msra.mxu0 0.0
        %489 = vmatprep.subr.mxu0 0.0
        %490 = vmatpush2.msra.mxu0 0.0
        %491 = vmatprep.subr.mxu0 0.0
        %492 = vmatpush2.msra.mxu0 0.0
        %493 = vmatprep.subr.mxu0 0.0
        %494 = vmatpush2.msra.mxu0 0.0
        %495 = vmatprep.subr.mxu0 0.0
        %496 = vmatpush2.msra.mxu0 0.0
        %497 = vmatprep.subr.mxu0 0.0
        %498 = vmatpush2.msra.mxu0 0.0
        %499 = vmatprep.subr.mxu0 0.0
        %500 = vmatpush2.msra.mxu0 0.0
        %501 = vmatprep.subr.mxu0 0.0
        %502 = vmatpush2.msra.mxu0 0.0
        %503 = vmatprep.subr.mxu0 0.0
        %504 = vmatpush2.msra.mxu0 0.0
        %505 = vmatprep.subr.mxu0 0.0
        %506 = vmatpush2.msra.mxu0 0.0
        %507 = vmatprep.subr.mxu0 0.0
        %508 = vmatpush2.msra.mxu0 0.0
        %509 = vmatprep.subr.mxu0 0.0
        %510 = vmatpush2.msra.mxu0 0.0
        %511 = vmatprep.subr.mxu0 0.0
        %512 = vmatpush2.msra.mxu0 0.0
        %513 = vmatprep.subr.mxu0 0.0
        %514 = vmatpush2.msra.mxu0 0.0
        %515 = vmatprep.subr.mxu0 0.0
        %516 = vmatpush2.msra.mxu0 0.0
        %517 = vmatprep.mubr.f32.mxu0 0.0
        %518 = vmatmul.mubr.f32.gmra.mxu0 %v451
        %v519 = vpop.f32.mrf.mxu0
        %v520 = vadd.f32 %v447, %v519
        %v521 = vpop.f32.mrf.mxu0
        %522 = vdwg.mxu0
        %v523 = vpack.c.bf16 %v520, %v520
        %v524 = vld [vmem:[#allocation2] sm:$0xf]
        %vm525 = vcmask 130048
        %v527 = vsel %vm525, %v524, 0
        %v530 = vsel %vm525, %v523, 0
        %532 = vmatprep.subr.bf16.mxu0 0
        %533 = vmatpush1.bf16.xpose.msra.mxu0 0
        %534 = vmatprep.subr.bf16.mxu0 0
        %535 = vmatpush1.bf16.xpose.msra.mxu0 0
        %536 = vmatprep.subr.bf16.mxu0 0
        %537 = vmatpush1.bf16.xpose.msra.mxu0 0
        %538 = vmatprep.subr.bf16.mxu0 0
        %539 = vmatpush1.bf16.xpose.msra.mxu0 0
        %540 = vmatprep.subr.bf16.mxu0 0
        %541 = vmatpush1.bf16.xpose.msra.mxu0 0
        %542 = vmatprep.subr.bf16.mxu0 0
        %543 = vmatpush1.bf16.xpose.msra.mxu0 0
        %544 = vmatprep.subr.bf16.mxu0 0
        %545 = vmatpush1.bf16.xpose.msra.mxu0 0
        %546 = vmatprep.subr.bf16.mxu0 0
        %547 = vmatpush1.bf16.xpose.msra.mxu0 %v530
        %548 = vmatprep.subr.bf16.mxu0 0
        %549 = vmatpush2.bf16.xpose.msra.mxu0 0
        %550 = vmatprep.subr.bf16.mxu0 0
        %551 = vmatpush2.bf16.xpose.msra.mxu0 0
        %552 = vmatprep.subr.bf16.mxu0 0
        %553 = vmatpush2.bf16.xpose.msra.mxu0 0
        %554 = vmatprep.subr.bf16.mxu0 0
        %555 = vmatpush2.bf16.xpose.msra.mxu0 0
        %556 = vmatprep.subr.bf16.mxu0 0
        %557 = vmatpush2.bf16.xpose.msra.mxu0 0
        %558 = vmatprep.subr.bf16.mxu0 0
        %559 = vmatpush2.bf16.xpose.msra.mxu0 0
        %560 = vmatprep.subr.bf16.mxu0 0
        %561 = vmatpush2.bf16.xpose.msra.mxu0 0
        %562 = vmatprep.subr.bf16.mxu0 0
        %563 = vmatpush2.bf16.xpose.msra.mxu0 0
        %564 = vmatprep.mubr.bf16.mxu0 0
        %565 = vmatmul.mubr.bf16.gmra.mxu0 %v527
        %v566 = vpop.f32.mrf.mxu0
        %v567 = vadd.f32 0.0, %v566
        %v568 = vpop.f32.mrf.mxu0
        %v569 = vpop.f32.mrf.mxu0
        %v570 = vpop.f32.mrf.mxu0
        %571 = vdwg.mxu0
        %v572 = vld [vmem:[#allocation3] sm:$0xff]
        %vm573 = vcmask 64512
        %v574 = vsel %vm573, %v567, -inf
        %575 = vmax.xlane.f32.xlu0 %v574
        %v576 = vpop.xlane.xlu0 %575
        %v577 = vmax.f32 %v572, %v576
        %v578 = vsub.f32 %v572, %v577
        %v579 = vmul.f32 %v578, 1.442695
        %v580 = vpow.pop %v579
        %582 = vset.pattern.permute.xlu0 0
        %583 = vperm.xlu0 %582, %v577
        %v584 = vpop.permute.xlu0 %583
        %v586 = vsub.f32 %v567, %v584
        %v587 = vmul.f32 %v586, 1.442695
        %v588 = vpow.pop %v587
        %v589 = vld [vmem:[#allocation4] sm:$0xff]
        %v590 = vmul.f32 %v580, %v589
        %v591 = vsel %vm573, %v588, 0.0
        %592 = vadd.xlane.f32.xlu0 %v591
        %v593 = vpop.xlane.xlu0 %592
        %v594 = vadd.f32 %v590, %v593
        %vm595 = vcmask 7168
        %596 = vst.msk [vmem:[#allocation4] sm:$0xff] %vm595, %v594
        %v597 = vld [vmem:[#allocation5] sm:$0xff]
        %599 = vset.pattern.permute.xlu0 0
        %600 = vperm.xlu0 %599, %v580
        %v601 = vpop.permute.xlu0 %600
        %v603 = vmul.f32 %v601, %v597
        %v604 = vpack.c.bf16 %v588, %v588
        %606 = vrot.lane.b32.xlu0 %v523, 112
        %v607 = vpop.permute.xlu0 %606
        %v609 = vsel %vm573, %v604, 0
        %vm611 = vcmask 1043456
        %v613 = vsel %vm611, %v607, 0
        %615 = vmatprep.subr.bf16.mxu0 0
        %616 = vmatpush1.bf16.msra.mxu0 0
        %617 = vmatprep.subr.bf16.mxu0 0
        %618 = vmatpush1.bf16.msra.mxu0 0
        %619 = vmatprep.subr.bf16.mxu0 0
        %620 = vmatpush1.bf16.msra.mxu0 0
        %621 = vmatprep.subr.bf16.mxu0 0
        %622 = vmatpush1.bf16.msra.mxu0 0
        %623 = vmatprep.subr.bf16.mxu0 0
        %624 = vmatpush1.bf16.msra.mxu0 0
        %625 = vmatprep.subr.bf16.mxu0 0
        %626 = vmatpush1.bf16.msra.mxu0 0
        %627 = vmatprep.subr.bf16.mxu0 0
        %628 = vmatpush1.bf16.msra.mxu0 0
        %629 = vmatprep.subr.bf16.mxu0 0
        %630 = vmatpush1.bf16.msra.mxu0 %v613
        %631 = vmatprep.subr.bf16.mxu0 0
        %632 = vmatpush2.bf16.msra.mxu0 0
        %633 = vmatprep.subr.bf16.mxu0 0
        %634 = vmatpush2.bf16.msra.mxu0 0
        %635 = vmatprep.subr.bf16.mxu0 0
        %636 = vmatpush2.bf16.msra.mxu0 0
        %637 = vmatprep.subr.bf16.mxu0 0
        %638 = vmatpush2.bf16.msra.mxu0 0
        %639 = vmatprep.subr.bf16.mxu0 0
        %640 = vmatpush2.bf16.msra.mxu0 0
        %641 = vmatprep.subr.bf16.mxu0 0
        %642 = vmatpush2.bf16.msra.mxu0 0
        %643 = vmatprep.subr.bf16.mxu0 0
        %644 = vmatpush2.bf16.msra.mxu0 0
        %645 = vmatprep.subr.bf16.mxu0 0
        %646 = vmatpush2.bf16.msra.mxu0 0
        %647 = vmatprep.mubr.bf16.mxu0 0
        %648 = vmatmul.mubr.bf16.gmra.mxu0 %v609
        %v649 = vpop.f32.mrf.mxu0
        %v650 = vadd.f32 0.0, %v649
        %v651 = vpop.f32.mrf.mxu0
        %v652 = vpop.f32.mrf.mxu0
        %v653 = vpop.f32.mrf.mxu0
        %654 = vdwg.mxu0
        %v655 = vadd.f32 %v603, %v650
        %656 = vst.msk [vmem:[#allocation5] sm:$0xff] %vm449, %v655
        %657 = vst.msk [vmem:[#allocation3] sm:$0xff] %vm595, %v577
        %p658 = scmp.eq.s32.totalorder %s31, 1
        // Predicated region
        $region57: #{tpu_custom_call.1} parent=43 // pred_check
          %p659 = pneg %p658
        $region58: #{tpu_custom_call.1} parent=43 // pred_check_branch
          %661 = sbr.rel (%p659) target = $region60
        $region59: #{tpu_custom_call.1} parent=43 // pred_region
          %v662 = vld [vmem:[#allocation4] sm:$0xff]
          %v663 = vrcp.pop %v662
          %v664 = vld [vmem:[#allocation5] sm:$0xff]
          %666 = vset.pattern.permute.xlu0 0
          %667 = vperm.xlu0 %666, %v663
          %v668 = vpop.permute.xlu0 %667
          %v670 = vmul.f32 %v664, %v668
          %671 = vst.msk [vmem:[%s329] sm:$0xff] %vm449, %v670
        $region60: #{tpu_custom_call.1} parent=43 // pred_fallthru
          _
        %s672 = sand.u32 %s193, 1
        %s673 = scalar_lea.sflag [#allocation8], %s672
        %s674 = sand.u32 %s193, 1
        %s675 = smul.addr %s674, 8
        %s676 = scalar_lea.vmem [#allocation11], %s675
        // Predicated region
        $region61: #{tpu_custom_call.1} parent=43 // pred_check
          %p677 = pneg %p203
        $region62: #{tpu_custom_call.1} parent=43 // pred_check_branch
          %679 = sbr.rel (%p677) target = $region64
        $region63: #{tpu_custom_call.1} parent=43 // pred_region
          %s681 = ssub.s32 128, 128
          %682 = vsyncadd %s673, %s681
          %s683 = smul.addr %s29, 2
          %s684 = sadd.s32 %s30, %s683
          %s685 = smul.addr %s684, 128
          %s686 = scalar_lea.hbm %s6, %s685
          %s688 = sshll.u32 %s676, 4
          %s689 = int_to_ptr.vmem [resolvable:$true] %s688
          %691 = dma.vmem_to_hbm [thread:$0]  %s689, 128, %s686, %s673
        $region64: #{tpu_custom_call.1} parent=43 // pred_fallthru
          _
      $region44: #{tpu_custom_call.1} parent=5 // pred_fallthru
        _
      %p692 = scmp.le.s32.totalorder 2, %s19
      // Predicated region
      $region65: #{tpu_custom_call.1} parent=5 // pred_check
        %p693 = pneg %p692
      $region66: #{tpu_custom_call.1} parent=5 // pred_check_branch
        %695 = sbr.rel (%p693) target = $region68
      $region67: #{tpu_custom_call.1} parent=5 // pred_region
        %s696 = ssub.s32 %s19, 2
        // Predicated region
        $region69: #{tpu_custom_call.1} parent=67 // pred_check
          %p697 = pneg %p209
        $region70: #{tpu_custom_call.1} parent=67 // pred_check_branch
          %699 = sbr.rel (%p697) target = $region72
        $region71: #{tpu_custom_call.1} parent=67 // pred_region
          %s700 = sand.u32 %s194, 1
          %s701 = scalar_lea.sflag [#allocation8], %s700
          %s702 = sand.u32 %s194, 1
          %s703 = smul.addr %s702, 8
          %s704 = scalar_lea.vmem [#allocation11], %s703
          %705 = dma.done %s701, 128
        $region72: #{tpu_custom_call.1} parent=67 // pred_fallthru
          _
      $region68: #{tpu_custom_call.1} parent=5 // pred_fallthru
        _
    $region6: #{tpu_custom_call.1} parent=1 // loop_footer
      %s23 = sadd.s32 1, %s19
    $region7: #{tpu_custom_call.1} parent=1 // loop_footer_branch
      %18 = sbr.rel target = $region3
    $region8: #{tpu_custom_call.1} parent=1 // loop_exit
      _
    %706 = vsyncpa [#allocation7], 1
    %s707 = scalar_lea.sflag [#allocation7], 1
    %708 = vsyncpa %s707, 1
    %709 = vsyncpa [#allocation10], 1
    %710 = vsyncpa [#allocation8], 1
    %s711 = scalar_lea.sflag [#allocation8], 1
    %712 = vsyncpa %s711, 1

</llo_original>
